<compile_context>
chip_gen: v6e
topology: v6e:2x2x1
jax: 0.10.0
libtpu: 0.0.40
codegen_flags: <defaults>
</compile_context>

<pallas_src>
import math

import jax
import jax.numpy as jnp
from jax.experimental import pallas as pl
from jax.experimental.pallas import tpu as pltpu


def _gelu_new(x):
    # HF ACT2FN["gelu_new"] (tanh approximation), matches T5 gated-gelu experts.
    c = math.sqrt(2.0 / math.pi)
    return 0.5 * x * (1.0 + jnp.tanh(c * (x + 0.044715 * x * x * x)))


def _round_up(x, m):
    return (x + m - 1) // m * m


# ---------------------------------------------------------------------------
# Kernel: grid = (batch, token_tile, expert).  The expert axis is a reduction
# ("arbitrary"); the (ts, D) f32 accumulator lives in VMEM scratch.
# ---------------------------------------------------------------------------
def _moe_kernel(gates_sm, x_ref, wi01_ref, wo_ref, o_ref, acc_ref):
    b = pl.program_id(0)
    e = pl.program_id(2)

    @pl.when(e == 0)
    def _():
        acc_ref[...] = jnp.zeros_like(acc_ref)

    # x tile is bf16 and resident across the expert (reduction) axis.
    x = x_ref[...]                                            # (ts, D_pad) bf16
    # Fused wi_0 | wi_1 matmul -> (ts, 2*F_pad) f32.
    h01 = jnp.dot(x, wi01_ref[...], preferred_element_type=jnp.float32)
    f_pad = wi01_ref.shape[1] // 2
    h_gelu = _gelu_new(h01[:, :f_pad])
    h_lin = h01[:, f_pad:]
    h = (h_gelu * h_lin).astype(jnp.bfloat16)
    y = jnp.dot(h, wo_ref[...], preferred_element_type=jnp.float32)

    # Per-(batch, expert) gate weight read as a scalar from SMEM.
    g = gates_sm[b, e]
    acc_ref[...] += g * y

    @pl.when(e == pl.num_programs(2) - 1)
    def _():
        o_ref[...] = acc_ref[...].astype(o_ref.dtype)


_KNOWN_LABELS = ("classify", "nli", "mrc", "generate", "anaphora_resolution")


def _per_expert_weights(gate_vec, num_experts):
    # Literal reproduction of the PyTorch module:
    #   functional.softmax(gate[k], dim=0) on a 0-dim tensor is softmax over a
    #   single element and therefore 1.0 for every k.  The mixing weights thus
    #   collapse to all-ones regardless of the stored gate values.
    g = jnp.asarray(gate_vec, jnp.float32)
    return jnp.stack([jax.nn.softmax(g[k:k + 1])[0] for k in range(num_experts)])


def mta_stableweight_forward(hidden_states, type_label, params, *, tm=256):
    """hidden_states: (B, S, D) float32; type_label: list of per-batch strings."""
    B, S, D = hidden_states.shape
    wi0, wi1, wo = params["wi0"], params["wi1"], params["wo"]
    E, _, F = wi0.shape

    # --- per-batch gate table (B, E) -> SMEM via scalar prefetch -------------
    gate_rows = []
    for lbl in type_label:
        assert lbl in _KNOWN_LABELS, f"unknown type_label {lbl!r}"
        gate_rows.append(_per_expert_weights(params["gate_for_" + lbl], E))
    gates = jnp.stack(gate_rows, axis=0)  # (B, E) float32

    # --- lane-dense padding + tile sizing ------------------------------------
    D_pad = _round_up(D, 128)
    F_pad = _round_up(F, 128)
    ts = min(_round_up(tm, 8), _round_up(S, 8))   # token tile (rows per step)
    S_pad = _round_up(S, ts)

    x_p = jnp.pad(hidden_states.astype(jnp.bfloat16),
                  ((0, 0), (0, S_pad - S), (0, D_pad - D)))
    # Fuse wi_0 / wi_1 into a single (E, D_pad, 2*F_pad) bf16 weight.
    wi0_p = jnp.pad(wi0, ((0, 0), (0, D_pad - D), (0, F_pad - F)))
    wi1_p = jnp.pad(wi1, ((0, 0), (0, D_pad - D), (0, F_pad - F)))
    wi01_p = jnp.concatenate([wi0_p, wi1_p], axis=-1).astype(jnp.bfloat16)
    wo_p = jnp.pad(wo, ((0, 0), (0, F_pad - F), (0, D_pad - D))).astype(jnp.bfloat16)

    grid = (B, S_pad // ts, E)

    # VMEM budget: double-buffered inputs/outputs + accumulator, with headroom.
    vmem_need = (
        2 * ts * D_pad * 2                    # x tiles (bf16)
        + 2 * D_pad * (2 * F_pad) * 2         # wi01 tiles (bf16)
        + 2 * F_pad * D_pad * 2               # wo tiles (bf16)
        + 2 * ts * D_pad * 4                  # output tiles (f32)
        + ts * D_pad * 4                      # accumulator scratch (f32)
        + 4 * ts * F_pad * 4                  # in-kernel f32 temporaries
    )
    vmem_limit = min(max(32 * 1024 * 1024, int(vmem_need * 1.5) + (4 << 20)),
                     100 * 1024 * 1024)

    out = pl.pallas_call(
        _moe_kernel,
        out_shape=jax.ShapeDtypeStruct((B, S_pad, D_pad), hidden_states.dtype),
        grid_spec=pltpu.PrefetchScalarGridSpec(
            num_scalar_prefetch=1,
            grid=grid,
            in_specs=[
                # x tile: resident across the expert (reduction) axis.
                pl.BlockSpec((None, ts, D_pad), lambda b, s, e, g: (b, s, 0)),
                # one expert's weights streamed per reduction step.
                pl.BlockSpec((None, D_pad, 2 * F_pad), lambda b, s, e, g: (e, 0, 0)),
                pl.BlockSpec((None, F_pad, D_pad), lambda b, s, e, g: (e, 0, 0)),
            ],
            out_specs=pl.BlockSpec((None, ts, D_pad), lambda b, s, e, g: (b, s, 0)),
            scratch_shapes=[pltpu.VMEM((ts, D_pad), jnp.float32)],
        ),
        compiler_params=pltpu.CompilerParams(
            dimension_semantics=("parallel", "parallel", "arbitrary"),
            vmem_limit_bytes=vmem_limit,
        ),
    )(gates, x_p, wi01_p, wo_p)

    return out[:, :S, :D]


# ---------------------------------------------------------------------------
# Pure-JAX reference mirroring the PyTorch semantics (same bf16 matmul recipe
# as the kernel so the comparison isolates kernel bugs from precision).
# ---------------------------------------------------------------------------
def _ref_forward(hidden_states, type_label, params):
    E = params["wi0"].shape[0]
    xb = hidden_states.astype(jnp.bfloat16)
    ys = []
    for e in range(E):
        hg = _gelu_new(jnp.dot(xb, params["wi0"][e].astype(jnp.bfloat16),
                               preferred_element_type=jnp.float32))
        hl = jnp.dot(xb, params["wi1"][e].astype(jnp.bfloat16),
                     preferred_element_type=jnp.float32)
        h = (hg * hl).astype(jnp.bfloat16)
        ys.append(jnp.dot(h, params["wo"][e].astype(jnp.bfloat16),
                          preferred_element_type=jnp.float32))
    outs = []
    for i, lbl in enumerate(type_label):
        w = _per_expert_weights(params["gate_for_" + lbl], E)
        outs.append(sum(w[k] * ys[k][i] for k in range(E)))
    return jnp.stack(outs).astype(hidden_states.dtype)


def init_params(key, d_model, d_ff, num_experts):
    ks = jax.random.split(key, 3 * num_experts)

    def lin(k, fan_in, shape):
        bound = 1.0 / math.sqrt(fan_in)
        return jax.random.uniform(k, shape, jnp.float32, -bound, bound)

    # Weights stored stacked per expert and pre-transposed to (in, out).
    wi0 = jnp.stack([lin(ks[3 * e + 0], d_model, (d_model, d_ff))
                     for e in range(num_experts)])
    wi1 = jnp.stack([lin(ks[3 * e + 1], d_model, (d_model, d_ff))
                     for e in range(num_experts)])
    wo = jnp.stack([lin(ks[3 * e + 2], d_ff, (d_ff, d_model))
                    for e in range(num_experts)])
    return {
        "wi0": wi0, "wi1": wi1, "wo": wo,
        "gate_for_classify": jnp.array((0.6, 0.1, 0.1, 0.1, 0.1), jnp.float32),
        "gate_for_nli": jnp.array((0.1, 0.6, 0.1, 0.1, 0.1), jnp.float32),
        "gate_for_mrc": jnp.array((0.1, 0.1, 0.6, 0.1, 0.1), jnp.float32),
        "gate_for_generate": jnp.array((0.1, 0.1, 0.1, 0.6, 0.1), jnp.float32),
        "gate_for_anaphora_resolution": jnp.array((0.1, 0.1, 0.1, 0.1, 0.6),
                                                  jnp.float32),
    }


if __name__ == "__main__":
    B, S, D, F, E = 2, 8, 32, 64, 5
    key = jax.random.PRNGKey(0)
    kx, kp = jax.random.split(key)
    params = init_params(kp, D, F, E)
    x = jax.random.normal(kx, (B, S, D), jnp.float32)
    type_label = ["generate", "classify"]

    out = mta_stableweight_forward(x, type_label, params)
    out = jax.block_until_ready(out)

    ref = _ref_forward(x, type_label, params)
    assert out.shape == (B, S, D)
    max_err = float(jnp.max(jnp.abs(out - ref)))
    assert jnp.allclose(out, ref, atol=2e-2, rtol=2e-2), f"max abs diff {max_err}"
    print("KERNEL_OK")
</pallas_src>

<mosaic_0001>
module attributes {stable_mosaic.version = 11 : i64} {
  func.func @_moe_kernel(%arg0: i32, %arg1: i32, %arg2: i32, %arg3: memref<2x5xf32, #tpu.memory_space<smem>>, %arg4: memref<1x8x128xbf16, #tpu.memory_space<vmem>>, %arg5: memref<1x128x256xbf16, #tpu.memory_space<vmem>>, %arg6: memref<1x128x128xbf16, #tpu.memory_space<vmem>>, %arg7: memref<1x8x128xf32, #tpu.memory_space<vmem>>, %arg8: memref<8x128xf32, #tpu.memory_space<vmem>>) attributes {dimension_semantics = [#tpu.dimension_semantics<parallel>, #tpu.dimension_semantics<parallel>, #tpu.dimension_semantics<arbitrary>], iteration_bounds = array<i64: 2, 1, 5>, scalar_prefetch = 1 : i64, scratch_operands = 1 : i64, tpu.core_type = #tpu.core_type<tc>, window_params = [{transform_indices = @transform_0, window_bounds = array<i64: 1, 8, 128>}, {transform_indices = @transform_1, window_bounds = array<i64: 1, 128, 256>}, {transform_indices = @transform_2, window_bounds = array<i64: 1, 128, 128>}, {transform_indices = @transform_3, window_bounds = array<i64: 1, 8, 128>}]} {
    %c0_i32 = arith.constant 0 : i32
    %0 = arith.cmpi eq, %arg2, %c0_i32 : i32
    %1 = arith.extui %0 : i1 to i32
    %c0_i32_0 = arith.constant 0 : i32
    %2 = arith.cmpi ne, %1, %c0_i32_0 : i32
    scf.if %2 {
      %cst_19 = arith.constant 0.000000e+00 : f32
      %39 = vector.broadcast %cst_19 : f32 to vector<8x128xf32>
      %c0_20 = arith.constant 0 : index
      %c0_21 = arith.constant 0 : index
      %40 = vector.load %arg8[%c0_20, %c0_21] : memref<8x128xf32, #tpu.memory_space<vmem>>, vector<8x128xf32>
      tpu.vector_store %arg8[%c0_20, %c0_21], %39 {strides = array<i32>} : memref<8x128xf32, #tpu.memory_space<vmem>>, vector<8x128xf32>,
    } else {
    }
    %c0 = arith.constant 0 : index
    %c0_1 = arith.constant 0 : index
    %c0_2 = arith.constant 0 : index
    %3 = vector.load %arg4[%c0, %c0_1, %c0_2] : memref<1x8x128xbf16, #tpu.memory_space<vmem>>, vector<1x8x128xbf16>
    %4 = vector.shape_cast %3 : vector<1x8x128xbf16> to vector<8x128xbf16>
    %c0_3 = arith.constant 0 : index
    %c0_4 = arith.constant 0 : index
    %c0_5 = arith.constant 0 : index
    %5 = vector.load %arg5[%c0_3, %c0_4, %c0_5] : memref<1x128x256xbf16, #tpu.memory_space<vmem>>, vector<1x128x256xbf16>
    %6 = vector.shape_cast %5 : vector<1x128x256xbf16> to vector<128x256xbf16>
    %cst = arith.constant dense<0.000000e+00> : vector<8x256xf32>
    %7 = tpu.matmul %4, %6, %cst {dimension_numbers = #tpu.dot_dimension_numbers<[1], [0], [0], [1], [0, 0, 1, 1], [], []>} : vector<8x128xbf16>, vector<128x256xbf16>, vector<8x256xf32> -> vector<8x256xf32>
    %8 = vector.extract_strided_slice %7 {offsets = [0, 0], sizes = [8, 128], strides = [1, 1]} : vector<8x256xf32> to vector<8x128xf32>
    %cst_6 = arith.constant 5.000000e-01 : f32
    %9 = vector.broadcast %cst_6 : f32 to vector<8x128xf32>
    %10 = arith.mulf %9, %8 : vector<8x128xf32>
    %cst_7 = arith.constant 4.471500e-02 : f32
    %11 = vector.broadcast %cst_7 : f32 to vector<8x128xf32>
    %12 = arith.mulf %11, %8 : vector<8x128xf32>
    %13 = arith.mulf %12, %8 : vector<8x128xf32>
    %14 = arith.mulf %13, %8 : vector<8x128xf32>
    %15 = arith.addf %8, %14 : vector<8x128xf32>
    %cst_8 = arith.constant 0.797884583 : f32
    %16 = vector.broadcast %cst_8 : f32 to vector<8x128xf32>
    %17 = arith.mulf %16, %15 : vector<8x128xf32>
    %18 = math.tanh %17 : vector<8x128xf32>
    %cst_9 = arith.constant 1.000000e+00 : f32
    %19 = vector.broadcast %cst_9 : f32 to vector<8x128xf32>
    %20 = arith.addf %19, %18 : vector<8x128xf32>
    %21 = arith.mulf %10, %20 : vector<8x128xf32>
    %22 = vector.extract_strided_slice %7 {offsets = [0, 128], sizes = [8, 128], strides = [1, 1]} : vector<8x256xf32> to vector<8x128xf32>
    %23 = arith.mulf %21, %22 : vector<8x128xf32>
    %24 = arith.truncf %23 : vector<8x128xf32> to vector<8x128xbf16>
    %c0_10 = arith.constant 0 : index
    %c0_11 = arith.constant 0 : index
    %c0_12 = arith.constant 0 : index
    %25 = vector.load %arg6[%c0_10, %c0_11, %c0_12] : memref<1x128x128xbf16, #tpu.memory_space<vmem>>, vector<1x128x128xbf16>
    %26 = vector.shape_cast %25 : vector<1x128x128xbf16> to vector<128x128xbf16>
    %cst_13 = arith.constant dense<0.000000e+00> : vector<8x128xf32>
    %27 = tpu.matmul %24, %26, %cst_13 {dimension_numbers = #tpu.dot_dimension_numbers<[1], [0], [0], [1], [0, 0, 1, 1], [], []>} : vector<8x128xbf16>, vector<128x128xbf16>, vector<8x128xf32> -> vector<8x128xf32>
    %28 = arith.index_cast %arg0 : i32 to index
    %29 = arith.index_cast %arg2 : i32 to index
    %30 = memref.load %arg3[%28, %29] : memref<2x5xf32, #tpu.memory_space<smem>>
    %c0_14 = arith.constant 0 : index
    %c0_15 = arith.constant 0 : index
    %31 = vector.load %arg8[%c0_14, %c0_15] : memref<8x128xf32, #tpu.memory_space<vmem>>, vector<8x128xf32>
    %32 = vector.broadcast %30 : f32 to vector<8x128xf32>
    %33 = arith.mulf %32, %27 : vector<8x128xf32>
    %34 = arith.addf %31, %33 : vector<8x128xf32>
    %c0_16 = arith.constant 0 : index
    %c0_17 = arith.constant 0 : index
    %35 = vector.load %arg8[%c0_16, %c0_17] : memref<8x128xf32, #tpu.memory_space<vmem>>, vector<8x128xf32>
    tpu.vector_store %arg8[%c0_16, %c0_17], %34 {strides = array<i32>} : memref<8x128xf32, #tpu.memory_space<vmem>>, vector<8x128xf32>,
    %c4_i32 = arith.constant 4 : i32
    %36 = arith.cmpi eq, %arg2, %c4_i32 : i32
    %37 = arith.extui %36 : i1 to i32
    %c0_i32_18 = arith.constant 0 : i32
    %38 = arith.cmpi ne, %37, %c0_i32_18 : i32
    scf.if %38 {
      %c0_19 = arith.constant 0 : index
      %c0_20 = arith.constant 0 : index
      %39 = vector.load %arg8[%c0_19, %c0_20] : memref<8x128xf32, #tpu.memory_space<vmem>>, vector<8x128xf32>
      %c0_21 = arith.constant 0 : index
      %c0_22 = arith.constant 0 : index
      %c0_23 = arith.constant 0 : index
      %40 = vector.load %arg7[%c0_21, %c0_22, %c0_23] : memref<1x8x128xf32, #tpu.memory_space<vmem>>, vector<1x8x128xf32>
      %41 = vector.shape_cast %40 : vector<1x8x128xf32> to vector<8x128xf32>
      %42 = vector.shape_cast %39 : vector<8x128xf32> to vector<1x8x128xf32>
      tpu.vector_store %arg7[%c0_21, %c0_22, %c0_23], %42 {strides = array<i32>} : memref<1x8x128xf32, #tpu.memory_space<vmem>>, vector<1x8x128xf32>,
    } else {
    }
    return
  }
  func.func @transform_0(%arg0: i32, %arg1: i32, %arg2: i32, %arg3: memref<2x5xf32, #tpu.memory_space<smem>>) -> (i32, i32, i32) {
    %c0_i32 = arith.constant 0 : i32
    %c0_i32_0 = arith.constant 0 : i32
    return %arg0, %arg1, %c0_i32 : i32, i32, i32
  }
  func.func @transform_1(%arg0: i32, %arg1: i32, %arg2: i32, %arg3: memref<2x5xf32, #tpu.memory_space<smem>>) -> (i32, i32, i32) {
    %c0_i32 = arith.constant 0 : i32
    %c0_i32_0 = arith.constant 0 : i32
    %c0_i32_1 = arith.constant 0 : i32
    return %arg2, %c0_i32, %c0_i32_0 : i32, i32, i32
  }
  func.func @transform_2(%arg0: i32, %arg1: i32, %arg2: i32, %arg3: memref<2x5xf32, #tpu.memory_space<smem>>) -> (i32, i32, i32) {
    %c0_i32 = arith.constant 0 : i32
    %c0_i32_0 = arith.constant 0 : i32
    %c0_i32_1 = arith.constant 0 : i32
    return %arg2, %c0_i32, %c0_i32_0 : i32, i32, i32
  }
  func.func @transform_3(%arg0: i32, %arg1: i32, %arg2: i32, %arg3: memref<2x5xf32, #tpu.memory_space<smem>>) -> (i32, i32, i32) {
    %c0_i32 = arith.constant 0 : i32
    %c0_i32_0 = arith.constant 0 : i32
    return %arg0, %arg1, %c0_i32 : i32, i32, i32
  }
}

</mosaic_0001>

<llo_original>
// kernel: tpu_custom_call.1
$region0: #{tpu_custom_call.1}
  #allocation0 [shape = 'u32[]', space=smem, size = 0x4, offset = 0x4, fixed_abs, tag = 'smem constant byte address 0x4 - core index']
  #allocation1 [shape = 'u32[144,128]{1,0:T(1,128)}', space=vmem, size = 0x12000, scoped, tag = 'internal scratch']
  #allocation2 [shape = 'f32[8,128]{1,0:T(8,128)}', space=vmem, size = 0x1000, scoped, tag = 'scratch operand']
  #allocation3 [shape = 's32[1]{0}', space=sflag, size = 0x4, scoped, tag = 'scoped memory for tpu_custom_call.1']
  #allocation4 [shape = 'u8[1024]{0}', space=smem, size = 0x400, scoped, tag = 'prefetched SMEM operand 0']
  %s0 = inlined_call_operand.hbm [shape: f32[2,5], index: 0, kind: input, shape index: {}]
  %s1 = inlined_call_operand.hbm [shape: bf16[2,8,128], index: 1, kind: input, shape index: {}]
  %s2 = inlined_call_operand.hbm [shape: bf16[5,128,256], index: 2, kind: input, shape index: {}]
  %s3 = inlined_call_operand.hbm [shape: bf16[5,128,128], index: 3, kind: input, shape index: {}]
  %s4 = inlined_call_operand.hbm [shape: f32[2,8,128], index: 4, kind: output, shape index: {}]
  %s5 = sld [smem:[#allocation0]]
  $region65: #{tpu_custom_call.1} parent=0
    _
  %s7 = ssub.s32 1, %s5
  %s8 = scalar_select 0, %s7, %s5
  %10 = dma.hbm_to_smem %s0, 32, [#allocation4], [#allocation3]
  %11 = dma.done [#allocation3], 32
  %12 = sfence
  $region1: #{tpu_custom_call.1} parent=0
    #allocation5 [shape = 'u8[4096]{0}', space=vmem, size = 0x1000, scoped, tag = 'input window, operand 1']
    #allocation6 [shape = 's32[2]{0}', space=sflag, size = 0x8, scoped, tag = 'scoped memory for tpu_custom_call.1']
    #allocation7 [shape = 's32[2]{0}', space=sflag, size = 0x8, scoped, tag = 'scoped memory for tpu_custom_call.1']
    #allocation8 [shape = 'u8[131072]{0}', space=vmem, size = 0x20000, scoped, tag = 'input window, operand 2']
    #allocation9 [shape = 's32[2]{0}', space=sflag, size = 0x8, scoped, tag = 'scoped memory for tpu_custom_call.1']
    #allocation10 [shape = 'u8[65536]{0}', space=vmem, size = 0x10000, scoped, tag = 'input window, operand 3']
    #allocation11 [shape = 'u8[8192]{0}', space=vmem, size = 0x2000, scoped, tag = 'output window, operand 0']
    %13 = vsyncpa [#allocation6], 0
    %s14 = scalar_lea.sflag [#allocation6], 1
    %15 = vsyncpa %s14, 0
    %16 = vsyncpa [#allocation9], 0
    %s17 = scalar_lea.sflag [#allocation9], 1
    %18 = vsyncpa %s17, 0
    %19 = vsyncpa [#allocation7], 0
    %s20 = scalar_lea.sflag [#allocation7], 1
    %21 = vsyncpa %s20, 0
    loop: start=0, step=1, limit=12
    $region2: #{tpu_custom_call.1} parent=1 // loop_pre_header
      _
    $region3: #{tpu_custom_call.1} parent=1 // loop_header
      %s23 = sphi 0, %s27
      %p24 = scmp.ge.s32.totalorder %s23, 12
      %s30 = sphi 0, %s49
      %s31 = sphi 0, %s45
      %s32 = sphi 0, %s41
      %s33 = sphi 0, %s30
      %s34 = sphi 0, %s31
      %s35 = sphi 0, %s32
      %s36 = sphi 0, %s33
      %s37 = sphi 0, %s34
      %s38 = sphi 0, %s35
      %s54 = sphi 0, %s56
      %s57 = sphi 0, %s54
      %s58 = sphi 0, %s57
      %s74 = sphi 0, %s58
      %s80 = sphi 0, %s82
      %s83 = sphi 0, %s80
      %s84 = sphi 0, %s83
      %s100 = sphi 0, %s84
      %s106 = sphi 0, %s108
      %s109 = sphi 0, %s106
      %s110 = sphi 0, %s109
      %s126 = sphi 0, %s110
      %s134 = sphi 0, %s136
      %s137 = sphi 0, %s134
      %s138 = sphi 0, %s137
      %s154 = sphi 0, %s138
    $region4: #{tpu_custom_call.1} parent=1 // loop_header_branch
      %26 = sbr.rel (%p24) target = $region8
    $region5: #{tpu_custom_call.1} parent=1 // loop_body
      %s28 = ssub.s32 %s23, 1
      %s29 = ssub.s32 %s23, 2
      %s39 = sadd.s32 1, %s32
      %p40 = scmp.ge.s32.totalorder %s39, 5
      %s41 = scalar_select %p40, 0, %s39
      %s42 = sadd.s32 1, %s31
      %s43 = scalar_select %p40, %s42, %s31
      %p44 = scmp.ge.s32.totalorder %s43, 1
      %s45 = scalar_select %p44, 0, %s43
      %s46 = sadd.s32 1, %s30
      %s47 = scalar_select %p44, %s46, %s30
      %p48 = scmp.ge.s32.totalorder %s47, 2
      %s49 = scalar_select %p48, 0, %s47
      %s50 = ssub.s32 %s30, %s49
      %s51 = ssub.s32 %s31, %s45
      %s52 = sor.u32 %s50, %s51
      %p53 = scmp.eq.s32.totalorder %s52, 0
      %s55 = sadd.s32 %s54, 1
      %s56 = scalar_select %p53, %s54, %s55
      %p59 = pneg %p53
      %p60 = scmp.eq.s32.totalorder %s23, 9
      %p61 = por %p59, %p60
      %p62 = scmp.ne.s32.totalorder %s54, %s57
      %p63 = scmp.eq.s32.totalorder %s23, 0
      %p64 = por %p62, %p63
      %p65 = scmp.ne.s32.totalorder %s54, %s57
      %p66 = scmp.eq.s32.totalorder %s28, 9
      %p67 = por %p65, %p66
      %p68 = scmp.ne.s32.totalorder %s57, %s58
      %p69 = scmp.eq.s32.totalorder %s28, 0
      %p70 = por %p68, %p69
      %p71 = scmp.ne.s32.totalorder %s57, %s58
      %p72 = scmp.eq.s32.totalorder %s29, 9
      %p73 = por %p71, %p72
      %p75 = scmp.ne.s32.totalorder %s58, %s74
      %p76 = scmp.eq.s32.totalorder %s29, 0
      %p77 = por %p75, %p76
      %s78 = ssub.s32 %s32, %s41
      %p79 = scmp.eq.s32.totalorder %s78, 0
      %s81 = sadd.s32 %s80, 1
      %s82 = scalar_select %p79, %s80, %s81
      %p85 = pneg %p79
      %p86 = scmp.eq.s32.totalorder %s23, 9
      %p87 = por %p85, %p86
      %p88 = scmp.ne.s32.totalorder %s80, %s83
      %p89 = scmp.eq.s32.totalorder %s23, 0
      %p90 = por %p88, %p89
      %p91 = scmp.ne.s32.totalorder %s80, %s83
      %p92 = scmp.eq.s32.totalorder %s28, 9
      %p93 = por %p91, %p92
      %p94 = scmp.ne.s32.totalorder %s83, %s84
      %p95 = scmp.eq.s32.totalorder %s28, 0
      %p96 = por %p94, %p95
      %p97 = scmp.ne.s32.totalorder %s83, %s84
      %p98 = scmp.eq.s32.totalorder %s29, 9
      %p99 = por %p97, %p98
      %p101 = scmp.ne.s32.totalorder %s84, %s100
      %p102 = scmp.eq.s32.totalorder %s29, 0
      %p103 = por %p101, %p102
      %s104 = ssub.s32 %s32, %s41
      %p105 = scmp.eq.s32.totalorder %s104, 0
      %s107 = sadd.s32 %s106, 1
      %s108 = scalar_select %p105, %s106, %s107
      %p111 = pneg %p105
      %p112 = scmp.eq.s32.totalorder %s23, 9
      %p113 = por %p111, %p112
      %p114 = scmp.ne.s32.totalorder %s106, %s109
      %p115 = scmp.eq.s32.totalorder %s23, 0
      %p116 = por %p114, %p115
      %p117 = scmp.ne.s32.totalorder %s106, %s109
      %p118 = scmp.eq.s32.totalorder %s28, 9
      %p119 = por %p117, %p118
      %p120 = scmp.ne.s32.totalorder %s109, %s110
      %p121 = scmp.eq.s32.totalorder %s28, 0
      %p122 = por %p120, %p121
      %p123 = scmp.ne.s32.totalorder %s109, %s110
      %p124 = scmp.eq.s32.totalorder %s29, 9
      %p125 = por %p123, %p124
      %p127 = scmp.ne.s32.totalorder %s110, %s126
      %p128 = scmp.eq.s32.totalorder %s29, 0
      %p129 = por %p127, %p128
      %s130 = ssub.s32 %s30, %s49
      %s131 = ssub.s32 %s31, %s45
      %s132 = sor.u32 %s130, %s131
      %p133 = scmp.eq.s32.totalorder %s132, 0
      %s135 = sadd.s32 %s134, 1
      %s136 = scalar_select %p133, %s134, %s135
      %p139 = pneg %p133
      %p140 = scmp.eq.s32.totalorder %s23, 9
      %p141 = por %p139, %p140
      %p142 = scmp.ne.s32.totalorder %s134, %s137
      %p143 = scmp.eq.s32.totalorder %s23, 0
      %p144 = por %p142, %p143
      %p145 = scmp.ne.s32.totalorder %s134, %s137
      %p146 = scmp.eq.s32.totalorder %s28, 9
      %p147 = por %p145, %p146
      %p148 = scmp.ne.s32.totalorder %s137, %s138
      %p149 = scmp.eq.s32.totalorder %s28, 0
      %p150 = por %p148, %p149
      %p151 = scmp.ne.s32.totalorder %s137, %s138
      %p152 = scmp.eq.s32.totalorder %s29, 9
      %p153 = por %p151, %p152
      %p155 = scmp.ne.s32.totalorder %s138, %s154
      %p156 = scmp.eq.s32.totalorder %s29, 0
      %p157 = por %p155, %p156
      %p158 = scmp.le.s32.totalorder 1, %s23
      %p159 = scmp.lt.s32.totalorder %s23, 11
      %p160 = pnand %p158, %p159
      %p161 = pneg %p160
      // Predicated region
      $region9: #{tpu_custom_call.1} parent=5 // pred_check
        _
      $region10: #{tpu_custom_call.1} parent=5 // pred_check_branch
        %163 = sbr.rel (%p160) target = $region12
      $region11: #{tpu_custom_call.1} parent=5 // pred_region
        %s164 = ssub.s32 %s23, 1
      $region12: #{tpu_custom_call.1} parent=5 // pred_fallthru
        _
      %p165 = scmp.lt.s32.totalorder %s23, 10
      // Predicated region
      $region13: #{tpu_custom_call.1} parent=5 // pred_check
        %p166 = pneg %p165
      $region14: #{tpu_custom_call.1} parent=5 // pred_check_branch
        %168 = sbr.rel (%p166) target = $region16
      $region15: #{tpu_custom_call.1} parent=5 // pred_region
        // Predicated region
        $region17: #{tpu_custom_call.1} parent=15 // pred_check
          %p169 = pneg %p64
        $region18: #{tpu_custom_call.1} parent=15 // pred_check_branch
          %171 = sbr.rel (%p169) target = $region20
        $region19: #{tpu_custom_call.1} parent=15 // pred_region
          %s172 = sand.u32 %s54, 1
          %s173 = scalar_lea.sflag [#allocation6], %s172
          %s174 = sand.u32 %s54, 1
          %s175 = smul.addr %s174, 4
          %s176 = scalar_lea.vmem [#allocation5], %s175
          %s178 = ssub.s32 64, 64
          %179 = vsyncadd %s173, %s178
          %s180 = sadd.s32 %s31, %s30
          %s181 = smul.addr %s180, 64
          %s182 = scalar_lea.hbm %s1, %s181
          %s184 = sshll.u32 %s176, 4
          %s185 = int_to_ptr.vmem [resolvable:$true] %s184
          %187 = dma.hbm_to_vmem [thread:$0]  %s182, 64, %s185, %s173
        $region20: #{tpu_custom_call.1} parent=15 // pred_fallthru
          _
        // Predicated region
        $region21: #{tpu_custom_call.1} parent=15 // pred_check
          %p188 = pneg %p90
        $region22: #{tpu_custom_call.1} parent=15 // pred_check_branch
          %190 = sbr.rel (%p188) target = $region24
        $region23: #{tpu_custom_call.1} parent=15 // pred_region
          %s191 = sand.u32 %s23, 1
          %s192 = scalar_lea.sflag [#allocation9], %s191
          %s193 = sand.u32 %s80, 1
          %s194 = smul.addr %s193, 128
          %s195 = scalar_lea.vmem [#allocation8], %s194
          %s197 = ssub.s32 2048, 2048
          %198 = vsyncadd %s192, %s197
          %s199 = smul.addr %s32, 32
          %s200 = smul.addr %s199, 64
          %s201 = scalar_lea.hbm %s2, %s200
          %s202 = sshll.u32 %s195, 4
          %s203 = int_to_ptr.vmem [resolvable:$true] %s202
          %208 = dma.hbm_to_vmem [thread:$0]  %s201, 2048, %s203, %s192, 128, 128, 8
        $region24: #{tpu_custom_call.1} parent=15 // pred_fallthru
          _
        // Predicated region
        $region25: #{tpu_custom_call.1} parent=15 // pred_check
          %p209 = pneg %p116
        $region26: #{tpu_custom_call.1} parent=15 // pred_check_branch
          %211 = sbr.rel (%p209) target = $region28
        $region27: #{tpu_custom_call.1} parent=15 // pred_region
          %s212 = sand.u32 %s23, 1
          %s213 = scalar_lea.sflag [#allocation9], %s212
          %s214 = sand.u32 %s106, 1
          %s215 = smul.addr %s214, 64
          %s216 = scalar_lea.vmem [#allocation10], %s215
          %s218 = ssub.s32 1024, 1024
          %219 = vsyncadd %s213, %s218
          %s220 = smul.addr %s32, 16
          %s221 = smul.addr %s220, 64
          %s222 = scalar_lea.hbm %s3, %s221
          %s223 = sshll.u32 %s216, 4
          %s224 = int_to_ptr.vmem [resolvable:$true] %s223
          %229 = dma.hbm_to_vmem [thread:$0]  %s222, 1024, %s224, %s213, 64, 64, 4
        $region28: #{tpu_custom_call.1} parent=15 // pred_fallthru
          _
      $region16: #{tpu_custom_call.1} parent=5 // pred_fallthru
        _
      %p230 = scmp.le.s32.totalorder 1, %s23
      %p231 = scmp.lt.s32.totalorder %s23, 11
      %p232 = pnand %p230, %p231
      %p233 = pneg %p232
      // Predicated region
      $region29: #{tpu_custom_call.1} parent=5 // pred_check
        _
      $region30: #{tpu_custom_call.1} parent=5 // pred_check_branch
        %235 = sbr.rel (%p232) target = $region32
      $region31: #{tpu_custom_call.1} parent=5 // pred_region
        %s236 = ssub.s32 %s23, 1
        %s237 = sand.u32 %s57, 1
        %s238 = scalar_lea.sflag [#allocation6], %s237
        %s239 = sand.u32 %s57, 1
        %s240 = smul.addr %s239, 4
        %s241 = scalar_lea.vmem [#allocation5], %s240
        // Predicated region
        $region33: #{tpu_custom_call.1} parent=31 // pred_check
          %p242 = pneg %p70
        $region34: #{tpu_custom_call.1} parent=31 // pred_check_branch
          %244 = sbr.rel (%p242) target = $region36
        $region35: #{tpu_custom_call.1} parent=31 // pred_region
          %245 = dma.done %s238, 64
        $region36: #{tpu_custom_call.1} parent=31 // pred_fallthru
          _
        %s246 = sand.u32 %s28, 1
        %s247 = scalar_lea.sflag [#allocation9], %s246
        %s248 = sand.u32 %s83, 1
        %s249 = smul.addr %s248, 128
        %s250 = scalar_lea.vmem [#allocation8], %s249
        // Predicated region
        $region37: #{tpu_custom_call.1} parent=31 // pred_check
          %p251 = pneg %p96
        $region38: #{tpu_custom_call.1} parent=31 // pred_check_branch
          %253 = sbr.rel (%p251) target = $region40
        $region39: #{tpu_custom_call.1} parent=31 // pred_region
          %254 = dma.done %s247, 2048
        $region40: #{tpu_custom_call.1} parent=31 // pred_fallthru
          _
        %s255 = sand.u32 %s28, 1
        %s256 = scalar_lea.sflag [#allocation9], %s255
        %s257 = sand.u32 %s109, 1
        %s258 = smul.addr %s257, 64
        %s259 = scalar_lea.vmem [#allocation10], %s258
        // Predicated region
        $region41: #{tpu_custom_call.1} parent=31 // pred_check
          %p260 = pneg %p122
        $region42: #{tpu_custom_call.1} parent=31 // pred_check_branch
          %262 = sbr.rel (%p260) target = $region44
        $region43: #{tpu_custom_call.1} parent=31 // pred_region
          %263 = dma.done %s256, 1024
        $region44: #{tpu_custom_call.1} parent=31 // pred_fallthru
          _
        %s264 = sand.u32 %s57, 1
        %s265 = scalar_lea.sflag [#allocation6], %s264
        %s266 = sand.u32 %s57, 1
        %s267 = smul.addr %s266, 4
        %s268 = scalar_lea.vmem [#allocation5], %s267
        %p269 = pneg %p70
        %p270 = pneg %p67
        %s271 = sand.u32 %s28, 1
        %s272 = scalar_lea.sflag [#allocation9], %s271
        %s273 = sand.u32 %s83, 1
        %s274 = smul.addr %s273, 128
        %s275 = scalar_lea.vmem [#allocation8], %s274
        %p276 = pneg %p96
        %p277 = pneg %p93
        %s278 = sand.u32 %s28, 1
        %s279 = scalar_lea.sflag [#allocation9], %s278
        %s280 = sand.u32 %s109, 1
        %s281 = smul.addr %s280, 64
        %s282 = scalar_lea.vmem [#allocation10], %s281
        %p283 = pneg %p122
        %p284 = pneg %p119
        %p285 = pneg %p150
        %p286 = pneg %p147
        %s287 = sand.u32 %s137, 1
        %s288 = scalar_lea.sflag [#allocation7], %s287
        %s289 = sand.u32 %s137, 1
        %s290 = smul.addr %s289, 8
        %s291 = scalar_lea.vmem [#allocation11], %s290
        %p293 = scmp.eq.s32.totalorder %s35, 0
        // Predicated region
        $region45: #{tpu_custom_call.1} parent=31 // pred_check
          %p294 = pneg %p293
        $region46: #{tpu_custom_call.1} parent=31 // pred_check_branch
          %296 = sbr.rel (%p294) target = $region48
        $region47: #{tpu_custom_call.1} parent=31 // pred_region
          %297 = vst [vmem:[#allocation2] sm:$0xff] 0.0
        $region48: #{tpu_custom_call.1} parent=31 // pred_fallthru
          _
        %v298 = vld [vmem:[%s241] sm:$0xf]
        %v299 = vld [vmem:[%s250] sm:$0xff]
        %v300 = vld [vmem:[%s250 + $0x8] sm:$0xff]
        %v301 = vld [vmem:[%s250 + $0x10] sm:$0xff]
        %v302 = vld [vmem:[%s250 + $0x18] sm:$0xff]
        %v303 = vld [vmem:[%s250 + $0x20] sm:$0xff]
        %v304 = vld [vmem:[%s250 + $0x28] sm:$0xff]
        %v305 = vld [vmem:[%s250 + $0x30] sm:$0xff]
        %v306 = vld [vmem:[%s250 + $0x38] sm:$0xff]
        %v307 = vld [vmem:[%s250 + $0x40] sm:$0xff]
        %v308 = vld [vmem:[%s250 + $0x48] sm:$0xff]
        %v309 = vld [vmem:[%s250 + $0x50] sm:$0xff]
        %v310 = vld [vmem:[%s250 + $0x58] sm:$0xff]
        %v311 = vld [vmem:[%s250 + $0x60] sm:$0xff]
        %v312 = vld [vmem:[%s250 + $0x68] sm:$0xff]
        %v313 = vld [vmem:[%s250 + $0x70] sm:$0xff]
        %v314 = vld [vmem:[%s250 + $0x78] sm:$0xff]
        %v331 = vunpack.c.l.b16 %v299
        %v332 = vunpack.c.h.b16 %v299
        %v333 = vunpack.c.l.b16 %v300
        %v334 = vunpack.c.h.b16 %v300
        %v335 = vunpack.c.l.b16 %v301
        %v336 = vunpack.c.h.b16 %v301
        %v337 = vunpack.c.l.b16 %v302
        %v338 = vunpack.c.h.b16 %v302
        %v339 = vunpack.c.l.b16 %v303
        %v340 = vunpack.c.h.b16 %v303
        %v341 = vunpack.c.l.b16 %v304
        %v342 = vunpack.c.h.b16 %v304
        %v343 = vunpack.c.l.b16 %v305
        %v344 = vunpack.c.h.b16 %v305
        %v345 = vunpack.c.l.b16 %v306
        %v346 = vunpack.c.h.b16 %v306
        %v347 = vunpack.c.l.b16 %v307
        %v348 = vunpack.c.h.b16 %v307
        %v349 = vunpack.c.l.b16 %v308
        %v350 = vunpack.c.h.b16 %v308
        %v351 = vunpack.c.l.b16 %v309
        %v352 = vunpack.c.h.b16 %v309
        %v353 = vunpack.c.l.b16 %v310
        %v354 = vunpack.c.h.b16 %v310
        %v355 = vunpack.c.l.b16 %v311
        %v356 = vunpack.c.h.b16 %v311
        %v357 = vunpack.c.l.b16 %v312
        %v358 = vunpack.c.h.b16 %v312
        %v359 = vunpack.c.l.b16 %v313
        %v360 = vunpack.c.h.b16 %v313
        %v361 = vunpack.c.l.b16 %v314
        %v362 = vunpack.c.h.b16 %v314
        %v363 = vpack.c.b16 %v333, %v331
        %v364 = vpack.c.b16 %v334, %v332
        %v365 = vpack.c.b16 %v337, %v335
        %v366 = vpack.c.b16 %v338, %v336
        %v367 = vpack.c.b16 %v341, %v339
        %v368 = vpack.c.b16 %v342, %v340
        %v369 = vpack.c.b16 %v345, %v343
        %v370 = vpack.c.b16 %v346, %v344
        %v371 = vpack.c.b16 %v349, %v347
        %v372 = vpack.c.b16 %v350, %v348
        %v373 = vpack.c.b16 %v353, %v351
        %v374 = vpack.c.b16 %v354, %v352
        %v375 = vpack.c.b16 %v357, %v355
        %v376 = vpack.c.b16 %v358, %v356
        %v377 = vpack.c.b16 %v361, %v359
        %v378 = vpack.c.b16 %v362, %v360
        %395 = vmatprep.subr.bf16.mxu0 %v378
        %396 = vmatpush1.bf16.msra.mxu0 %v377
        %397 = vmatprep.subr.bf16.mxu0 %v376
        %398 = vmatpush1.bf16.msra.mxu0 %v375
        %399 = vmatprep.subr.bf16.mxu0 %v374
        %400 = vmatpush1.bf16.msra.mxu0 %v373
        %401 = vmatprep.subr.bf16.mxu0 %v372
        %402 = vmatpush1.bf16.msra.mxu0 %v371
        %403 = vmatprep.subr.bf16.mxu0 %v370
        %404 = vmatpush1.bf16.msra.mxu0 %v369
        %405 = vmatprep.subr.bf16.mxu0 %v368
        %406 = vmatpush1.bf16.msra.mxu0 %v367
        %407 = vmatprep.subr.bf16.mxu0 %v366
        %408 = vmatpush1.bf16.msra.mxu0 %v365
        %409 = vmatprep.subr.bf16.mxu0 %v364
        %410 = vmatpush1.bf16.msra.mxu0 %v363
        %411 = vmatprep.subr.bf16.mxu0 0
        %412 = vmatpush2.bf16.msra.mxu0 0
        %413 = vmatprep.subr.bf16.mxu0 0
        %414 = vmatpush2.bf16.msra.mxu0 0
        %415 = vmatprep.subr.bf16.mxu0 0
        %416 = vmatpush2.bf16.msra.mxu0 0
        %417 = vmatprep.subr.bf16.mxu0 0
        %418 = vmatpush2.bf16.msra.mxu0 0
        %419 = vmatprep.subr.bf16.mxu0 0
        %420 = vmatpush2.bf16.msra.mxu0 0
        %421 = vmatprep.subr.bf16.mxu0 0
        %422 = vmatpush2.bf16.msra.mxu0 0
        %423 = vmatprep.subr.bf16.mxu0 0
        %424 = vmatpush2.bf16.msra.mxu0 0
        %425 = vmatprep.subr.bf16.mxu0 0
        %426 = vmatpush2.bf16.msra.mxu0 0
        %427 = vmatprep.mubr.bf16.mxu0 0
        %428 = vmatmul.mubr.bf16.gmra.mxu0 %v298
        %v429 = vpop.f32.mrf.mxu0
        %v430 = vadd.f32 0.0, %v429
        %v431 = vpop.f32.mrf.mxu0
        %v432 = vadd.f32 0.0, %v431
        %v433 = vpop.f32.mrf.mxu0
        %v434 = vpop.f32.mrf.mxu0
        %435 = vdwg.mxu0
        %v436 = vmul.f32 %v430, 0.5
        %v437 = vmul.f32 %v430, 0.044715
        %v438 = vmul.f32 %v437, %v430
        %v439 = vmul.f32 %v438, %v430
        %v440 = vadd.f32 %v430, %v439
        %v441 = vmul.f32 %v440, 0.7978846
        %v442 = vtanh.pop %v441
        %v443 = vadd.f32 %v442, 1.0
        %v444 = vmul.f32 %v436, %v443
        %v445 = vmul.f32 %v444, %v432
        %v446 = vpack.c.bf16 %v445, %v445
        %v447 = vld [vmem:[%s259] sm:$0xf]
        %v448 = vld [vmem:[%s259 + $0x4] sm:$0xf]
        %v449 = vld [vmem:[%s259 + $0x8] sm:$0xf]
        %v450 = vld [vmem:[%s259 + $0xc] sm:$0xf]
        %v451 = vld [vmem:[%s259 + $0x10] sm:$0xf]
        %v452 = vld [vmem:[%s259 + $0x14] sm:$0xf]
        %v453 = vld [vmem:[%s259 + $0x18] sm:$0xf]
        %v454 = vld [vmem:[%s259 + $0x1c] sm:$0xf]
        %v455 = vld [vmem:[%s259 + $0x20] sm:$0xf]
        %v456 = vld [vmem:[%s259 + $0x24] sm:$0xf]
        %v457 = vld [vmem:[%s259 + $0x28] sm:$0xf]
        %v458 = vld [vmem:[%s259 + $0x2c] sm:$0xf]
        %v459 = vld [vmem:[%s259 + $0x30] sm:$0xf]
        %v460 = vld [vmem:[%s259 + $0x34] sm:$0xf]
        %v461 = vld [vmem:[%s259 + $0x38] sm:$0xf]
        %v462 = vld [vmem:[%s259 + $0x3c] sm:$0xf]
        %v479 = vunpack.c.l.b16 %v447
        %v480 = vunpack.c.l.b16 %v448
        %v481 = vunpack.c.l.b16 %v449
        %v482 = vunpack.c.l.b16 %v450
        %v483 = vunpack.c.l.b16 %v451
        %v484 = vunpack.c.l.b16 %v452
        %v485 = vunpack.c.l.b16 %v453
        %v486 = vunpack.c.l.b16 %v454
        %v487 = vunpack.c.l.b16 %v455
        %v488 = vunpack.c.l.b16 %v456
        %v489 = vunpack.c.l.b16 %v457
        %v490 = vunpack.c.l.b16 %v458
        %v491 = vunpack.c.l.b16 %v459
        %v492 = vunpack.c.l.b16 %v460
        %v493 = vunpack.c.l.b16 %v461
        %v494 = vunpack.c.l.b16 %v462
        %v495 = vpack.c.b16 %v480, %v479
        %v496 = vpack.c.b16 %v482, %v481
        %v497 = vpack.c.b16 %v484, %v483
        %v498 = vpack.c.b16 %v486, %v485
        %v499 = vpack.c.b16 %v488, %v487
        %v500 = vpack.c.b16 %v490, %v489
        %v501 = vpack.c.b16 %v492, %v491
        %v502 = vpack.c.b16 %v494, %v493
        %511 = vmatprep.subr.bf16.mxu0 0
        %512 = vmatpush1.bf16.msra.mxu0 %v502
        %513 = vmatprep.subr.bf16.mxu0 0
        %514 = vmatpush1.bf16.msra.mxu0 %v501
        %515 = vmatprep.subr.bf16.mxu0 0
        %516 = vmatpush1.bf16.msra.mxu0 %v500
        %517 = vmatprep.subr.bf16.mxu0 0
        %518 = vmatpush1.bf16.msra.mxu0 %v499
        %519 = vmatprep.subr.bf16.mxu0 0
        %520 = vmatpush1.bf16.msra.mxu0 %v498
        %521 = vmatprep.subr.bf16.mxu0 0
        %522 = vmatpush1.bf16.msra.mxu0 %v497
        %523 = vmatprep.subr.bf16.mxu0 0
        %524 = vmatpush1.bf16.msra.mxu0 %v496
        %525 = vmatprep.subr.bf16.mxu0 0
        %526 = vmatpush1.bf16.msra.mxu0 %v495
        %527 = vmatprep.subr.bf16.mxu0 0
        %528 = vmatpush2.bf16.msra.mxu0 0
        %529 = vmatprep.subr.bf16.mxu0 0
        %530 = vmatpush2.bf16.msra.mxu0 0
        %531 = vmatprep.subr.bf16.mxu0 0
        %532 = vmatpush2.bf16.msra.mxu0 0
        %533 = vmatprep.subr.bf16.mxu0 0
        %534 = vmatpush2.bf16.msra.mxu0 0
        %535 = vmatprep.subr.bf16.mxu0 0
        %536 = vmatpush2.bf16.msra.mxu0 0
        %537 = vmatprep.subr.bf16.mxu0 0
        %538 = vmatpush2.bf16.msra.mxu0 0
        %539 = vmatprep.subr.bf16.mxu0 0
        %540 = vmatpush2.bf16.msra.mxu0 0
        %541 = vmatprep.subr.bf16.mxu0 0
        %542 = vmatpush2.bf16.msra.mxu0 0
        %543 = vmatprep.mubr.bf16.mxu0 0
        %544 = vmatmul.mubr.bf16.gmra.mxu0 %v446
        %v545 = vpop.f32.mrf.mxu0
        %v546 = vadd.f32 0.0, %v545
        %v547 = vpop.f32.mrf.mxu0
        %v548 = vpop.f32.mrf.mxu0
        %v549 = vpop.f32.mrf.mxu0
        %550 = vdwg.mxu0
        %s551 = sshra.s32 %s35, 7
        %s552 = sand.u32 %s35, 127
        %s553 = sadd.s32 %s551, %s33
        %s554 = smul.u32 %s553, 128
        %s555 = sshra.s32 %s35, 7
        %s556 = sand.u32 %s35, 127
        %s557 = sadd.s32 %s554, %s556
        %s558 = sld [smem:[#allocation4 + %s557]]
        %v559 = vld [vmem:[#allocation2] sm:$0xff]
        %v560 = vstv %s558
        %v561 = vmul.f32 %v560, %v546
        %v562 = vadd.f32 %v559, %v561
        %563 = vst [vmem:[#allocation2] sm:$0xff] %v562
        %p564 = scmp.eq.s32.totalorder %s35, 4
        // Predicated region
        $region49: #{tpu_custom_call.1} parent=31 // pred_check
          %p565 = pneg %p564
        $region50: #{tpu_custom_call.1} parent=31 // pred_check_branch
          %567 = sbr.rel (%p565) target = $region52
        $region51: #{tpu_custom_call.1} parent=31 // pred_region
          %v568 = vld [vmem:[#allocation2] sm:$0xff]
          %569 = vst [vmem:[%s291] sm:$0xff] %v568
        $region52: #{tpu_custom_call.1} parent=31 // pred_fallthru
          _
        %s570 = sand.u32 %s137, 1
        %s571 = scalar_lea.sflag [#allocation7], %s570
        %s572 = sand.u32 %s137, 1
        %s573 = smul.addr %s572, 8
        %s574 = scalar_lea.vmem [#allocation11], %s573
        // Predicated region
        $region53: #{tpu_custom_call.1} parent=31 // pred_check
          %p575 = pneg %p147
        $region54: #{tpu_custom_call.1} parent=31 // pred_check_branch
          %577 = sbr.rel (%p575) target = $region56
        $region55: #{tpu_custom_call.1} parent=31 // pred_region
          %s579 = ssub.s32 128, 128
          %580 = vsyncadd %s571, %s579
          %s581 = sadd.s32 %s34, %s33
          %s582 = smul.addr %s581, 128
          %s583 = scalar_lea.hbm %s4, %s582
          %s585 = sshll.u32 %s574, 4
          %s586 = int_to_ptr.vmem [resolvable:$true] %s585
          %588 = dma.vmem_to_hbm [thread:$0]  %s586, 128, %s583, %s571
        $region56: #{tpu_custom_call.1} parent=31 // pred_fallthru
          _
      $region32: #{tpu_custom_call.1} parent=5 // pred_fallthru
        _
      %p589 = scmp.le.s32.totalorder 2, %s23
      // Predicated region
      $region57: #{tpu_custom_call.1} parent=5 // pred_check
        %p590 = pneg %p589
      $region58: #{tpu_custom_call.1} parent=5 // pred_check_branch
        %592 = sbr.rel (%p590) target = $region60
      $region59: #{tpu_custom_call.1} parent=5 // pred_region
        %s593 = ssub.s32 %s23, 2
        // Predicated region
        $region61: #{tpu_custom_call.1} parent=59 // pred_check
          %p594 = pneg %p153
        $region62: #{tpu_custom_call.1} parent=59 // pred_check_branch
          %596 = sbr.rel (%p594) target = $region64
        $region63: #{tpu_custom_call.1} parent=59 // pred_region
          %s597 = sand.u32 %s138, 1
          %s598 = scalar_lea.sflag [#allocation7], %s597
          %s599 = sand.u32 %s138, 1
          %s600 = smul.addr %s599, 8
          %s601 = scalar_lea.vmem [#allocation11], %s600
          %602 = dma.done %s598, 128
        $region64: #{tpu_custom_call.1} parent=59 // pred_fallthru
          _
      $region60: #{tpu_custom_call.1} parent=5 // pred_fallthru
        _
    $region6: #{tpu_custom_call.1} parent=1 // loop_footer
      %s27 = sadd.s32 1, %s23
    $region7: #{tpu_custom_call.1} parent=1 // loop_footer_branch
      %22 = sbr.rel target = $region3
    $region8: #{tpu_custom_call.1} parent=1 // loop_exit
      _
    %603 = vsyncpa [#allocation6], 1
    %s604 = scalar_lea.sflag [#allocation6], 1
    %605 = vsyncpa %s604, 1
    %606 = vsyncpa [#allocation9], 1
    %s607 = scalar_lea.sflag [#allocation9], 1
    %608 = vsyncpa %s607, 1
    %609 = vsyncpa [#allocation7], 1
    %s610 = scalar_lea.sflag [#allocation7], 1
    %611 = vsyncpa %s610, 1

</llo_original>
